<compile_context>
chip_gen: v6e
topology: v6e:2x2x1
jax: 0.10.0
libtpu: 0.0.40
codegen_flags: <defaults>
</compile_context>

<pallas_src>
import functools

import jax
import jax.numpy as jnp
from jax import lax
from jax.experimental import pallas as pl
from jax.experimental.pallas import tpu as pltpu


def _astar_kernel(cost_ref, start_ref, goal_ref, obst_ref,
                  hist_ref, path_ref, child_ref, *,
                  W, g_ratio, tb_factor, Tmax):
    Bb, Np = cost_ref.shape            # batch tile x lane-padded H*W

    cost = cost_ref[...]
    start = start_ref[...]
    goal = goal_ref[...]
    obst_b = obst_ref[...] > 0.5

    iota_i = lax.broadcasted_iota(jnp.int32, (Bb, Np), 1)

    pow2 = (W & (W - 1)) == 0

    def row_col(idx):
        if pow2:
            r = jnp.right_shift(idx, W.bit_length() - 1)
            c = jnp.bitwise_and(idx, W - 1)
        else:
            # float reciprocal + floor is exact for idx < 2**23 (true here)
            r = jnp.floor(idx.astype(jnp.float32) * (1.0 / W)).astype(jnp.int32)
            c = idx - r * W
        return r, c

    row_i, col_i = row_col(iota_i)

    # goal location (goal maps are one-hot)
    goal_idx = jnp.min(jnp.where(goal > 0.5, iota_i, jnp.int32(Np)),
                       axis=-1, keepdims=True)                     # (Bb, 1)
    goal_r, goal_c = row_col(goal_idx)

    # heuristic (h_choice='dist'): chebyshev + tb_factor * euclidean,
    # pre-scaled by (1 - g_ratio) so the loop uses a single fma for f.
    dx = jnp.abs(row_i - goal_r).astype(jnp.float32)
    dy = jnp.abs(col_i - goal_c).astype(jnp.float32)
    h = dx + dy - jnp.minimum(dx, dy) + tb_factor * jnp.sqrt(dx * dx + dy * dy)
    hconst = (1.0 - g_ratio) * h

    BIG = jnp.float32(1e30)
    ONE = jnp.float32(1.0)
    ZERO = jnp.float32(0.0)

    # ---------------- forward A* loop (early exit via while_loop) -----------
    def fwd_cond(carry):
        t, done = carry[0], carry[1]
        return jnp.logical_and(t < Tmax, done == 0)

    def fwd_body(carry):
        t, _done, open_f, hist_f, g, parents = carry
        open_b = open_f > 0.5
        hist_b = hist_f > 0.5

        f = g * g_ratio + hconst
        f_open = jnp.where(open_b, f, BIG)
        fmin = jnp.min(f_open, axis=-1, keepdims=True)
        sel_idx = jnp.min(jnp.where(f_open == fmin, iota_i, jnp.int32(Np)),
                          axis=-1, keepdims=True)                  # (Bb, 1)
        sel_mask = iota_i == sel_idx

        unsolved = sel_idx != goal_idx                             # (Bb, 1)

        hist_n = jnp.logical_or(hist_b, sel_mask)
        open_rm = jnp.logical_and(
            open_b, jnp.logical_not(jnp.logical_and(sel_mask, unsolved)))

        # expand(): 8-neighbor indicator of the selected one-hot cell
        sel_r, sel_c = row_col(sel_idx)
        nb = jnp.logical_and(
            jnp.logical_and(jnp.abs(row_i - sel_r) <= 1,
                            jnp.abs(col_i - sel_c) <= 1),
            jnp.logical_not(sel_mask))
        nb = jnp.logical_and(nb, obst_b)

        # g2 == (g + delta_g)[sel] on neighbor cells (0 elsewhere); it is only
        # consumed under the `nb` mask, so the broadcast scalar suffices.
        v = jnp.sum(jnp.where(sel_mask, g + cost, ZERO),
                    axis=-1, keepdims=True)                        # (Bb, 1)

        idx = jnp.logical_and(
            jnp.logical_or(
                jnp.logical_and(jnp.logical_not(open_rm),
                                jnp.logical_not(hist_n)),
                jnp.logical_and(open_rm, g > v)),
            nb)

        g_n = jnp.where(idx, v, g)
        open_n = jnp.logical_or(open_rm, idx)
        parents_n = jnp.where(idx, sel_idx, parents)

        done_n = (jnp.max(jnp.where(unsolved, ONE, ZERO)) < 0.5
                  ).astype(jnp.int32)
        return (t + 1, done_n,
                jnp.where(open_n, ONE, ZERO),
                jnp.where(hist_n, ONE, ZERO),
                g_n, parents_n)

    parents0 = jnp.zeros((Bb, Np), jnp.int32) + goal_idx
    init = (jnp.int32(0), jnp.int32(0), start,
            jnp.zeros_like(start), jnp.zeros_like(start), parents0)
    t_end, _done, _open, hist_f, _g, parents_f = lax.while_loop(
        fwd_cond, fwd_body, init)
    # PyTorch breaks with loop variable t == (#iterations - 1); backtrack runs
    # exactly t steps.
    current_t = t_end - 1

    # ---------------- backtrack (dynamic trip count = current_t) ------------
    parents_ff = parents_f.astype(jnp.float32)
    goal_b = goal > 0.5
    path0 = goal_b.astype(jnp.int32)
    child0 = jnp.zeros((Bb, Np), jnp.int32)
    loc0 = jnp.sum(jnp.where(goal_b, parents_ff, ZERO),
                   axis=-1, keepdims=True).astype(jnp.int32)
    pre0 = goal_idx

    def bt_cond(carry):
        return carry[0] < current_t

    def bt_body(carry):
        i, path, child, loc, pre = carry
        onehot = iota_i == loc
        path_n = jnp.where(onehot, jnp.int32(1), path)
        child_n = jnp.where(onehot, pre, child)
        loc_n = jnp.sum(jnp.where(onehot, parents_ff, ZERO),
                        axis=-1, keepdims=True).astype(jnp.int32)
        return i + 1, path_n, child_n, loc_n, loc

    _, path_f, child_f, _, _ = lax.while_loop(
        bt_cond, bt_body, (jnp.int32(0), path0, child0, loc0, pre0))

    hist_ref[...] = hist_f
    path_ref[...] = path_f
    child_ref[...] = child_f


def differentiable_astar(cost_maps, start_maps, goal_maps, heuristic_maps,
                         obstacles_maps, *, g_ratio=0.5, Tmax_frac=1.0,
                         tb_factor=0.001):
    """Pallas port of DifferentiableAstar.forward (g='net-output', h='dist').

    Inputs are NCHW (B, 1, H, W). Returns (histories f32, path_maps i32,
    children i32), each reshaped back to (B, 1, H, W).
    """
    B, _, H, W = cost_maps.shape
    N = H * W
    N_pad = ((N + 127) // 128) * 128          # lane-dense last dim

    def flat(x):
        v = x[:, 0].reshape(B, N).astype(jnp.float32)
        if N_pad != N:
            # pad lanes are impassable (obst=0, start/goal/cost=0)
            v = jnp.pad(v, ((0, 0), (0, N_pad - N)))
        return v

    cost = flat(cost_maps)
    start = flat(start_maps)
    goal = flat(goal_maps)
    obst = flat(obstacles_maps)
    del heuristic_maps  # unused for h_choice='dist' (interface fidelity only)

    # ---- batch tiling -------------------------------------------------------
    BB = 32                                    # default wide tile (4x f32 sublanes)
    while BB > 8 and B <= BB // 2:             # don't over-pad tiny batches
        BB //= 2

    def _vmem_est(bb):
        # ~7 I/O blocks x2 buffers + ~30 live loop-state/temporary arrays
        return 44 * bb * N_pad * 4

    while BB > 8 and _vmem_est(BB) > 40 * 1024 * 1024:   # v7x 64 MiB safe cap
        BB //= 2

    grid_steps = max(2, -(-B // BB))           # >=2 steps so both v7x TCs get work
    B_pad = grid_steps * BB

    if B_pad != B:
        pad = B_pad - B
        # Padded rows: start == goal at cell 0 and no passable neighbors, so
        # they are "solved" at step 0 and never block the early-exit loop.
        onehot0 = jnp.zeros((pad, N_pad), jnp.float32).at[:, 0].set(1.0)
        zeros = jnp.zeros((pad, N_pad), jnp.float32)
        cost = jnp.concatenate([cost, zeros], axis=0)
        start = jnp.concatenate([start, onehot0], axis=0)
        goal = jnp.concatenate([goal, onehot0], axis=0)
        obst = jnp.concatenate([obst, zeros], axis=0)

    Tmax = int(Tmax_frac * W * W)  # reference uses size = cost_maps.shape[-1]

    kernel = functools.partial(_astar_kernel, W=W, g_ratio=g_ratio,
                               tb_factor=tb_factor, Tmax=Tmax)

    spec = pl.BlockSpec((BB, N_pad), lambda b: (b, 0))
    vmem_limit = int(min(48 * 1024 * 1024,
                         max(16 * 1024 * 1024, 3 * _vmem_est(BB))))

    hist, path, child = pl.pallas_call(
        kernel,
        out_shape=(jax.ShapeDtypeStruct((B_pad, N_pad), jnp.float32),
                   jax.ShapeDtypeStruct((B_pad, N_pad), jnp.int32),
                   jax.ShapeDtypeStruct((B_pad, N_pad), jnp.int32)),
        grid=(B_pad // BB,),
        in_specs=[spec, spec, spec, spec],
        out_specs=(spec, spec, spec),
        compiler_params=pltpu.CompilerParams(
            dimension_semantics=("parallel",),
            vmem_limit_bytes=vmem_limit),
    )(cost, start, goal, obst)

    return (hist[:B, :N].reshape(B, 1, H, W),
            path[:B, :N].reshape(B, 1, H, W),
            child[:B, :N].reshape(B, 1, H, W))


if __name__ == "__main__":
    key = jax.random.PRNGKey(0)
    B, H, W = 2, 16, 16

    cost_maps = jax.random.uniform(key, (B, 1, H, W), jnp.float32,
                                   minval=0.5, maxval=1.5)

    start_maps = jnp.zeros((B, 1, H, W), jnp.float32)
    start_maps = start_maps.at[0, 0, 1, 1].set(1.0)
    start_maps = start_maps.at[1, 0, 2, 3].set(1.0)

    goal_maps = jnp.zeros((B, 1, H, W), jnp.float32)
    goal_maps = goal_maps.at[0, 0, 14, 14].set(1.0)
    goal_maps = goal_maps.at[1, 0, 12, 10].set(1.0)

    obstacles_maps = jnp.ones((B, 1, H, W), jnp.float32)
    obstacles_maps = obstacles_maps.at[:, 0, 5:12, 8].set(0.0)  # partial wall

    heuristic_maps = jnp.zeros((B, 1, H, W), jnp.float32)  # unused for h='dist'

    hist, path, child = differentiable_astar(cost_maps, start_maps, goal_maps,
                                             heuristic_maps, obstacles_maps)
    jax.block_until_ready((hist, path, child))
    print("KERNEL_OK")
</pallas_src>

<mosaic_0001>
module attributes {stable_mosaic.version = 11 : i64} {
  func.func @_astar_kernel(%arg0: i32, %arg1: memref<8x256xf32, #tpu.memory_space<vmem>>, %arg2: memref<8x256xf32, #tpu.memory_space<vmem>>, %arg3: memref<8x256xf32, #tpu.memory_space<vmem>>, %arg4: memref<8x256xf32, #tpu.memory_space<vmem>>, %arg5: memref<8x256xf32, #tpu.memory_space<vmem>>, %arg6: memref<8x256xi32, #tpu.memory_space<vmem>>, %arg7: memref<8x256xi32, #tpu.memory_space<vmem>>) attributes {dimension_semantics = [#tpu.dimension_semantics<parallel>], iteration_bounds = array<i64: 2>, scalar_prefetch = 0 : i64, scratch_operands = 0 : i64, tpu.core_type = #tpu.core_type<tc>, window_params = [{transform_indices = @transform_0, window_bounds = array<i64: 8, 256>}, {transform_indices = @transform_1, window_bounds = array<i64: 8, 256>}, {transform_indices = @transform_2, window_bounds = array<i64: 8, 256>}, {transform_indices = @transform_3, window_bounds = array<i64: 8, 256>}, {transform_indices = @transform_4, window_bounds = array<i64: 8, 256>}, {transform_indices = @transform_5, window_bounds = array<i64: 8, 256>}, {transform_indices = @transform_6, window_bounds = array<i64: 8, 256>}]} {
    %c0 = arith.constant 0 : index
    %c0_0 = arith.constant 0 : index
    %0 = vector.load %arg1[%c0, %c0_0] : memref<8x256xf32, #tpu.memory_space<vmem>>, vector<8x256xf32>
    %c0_1 = arith.constant 0 : index
    %c0_2 = arith.constant 0 : index
    %1 = vector.load %arg2[%c0_1, %c0_2] : memref<8x256xf32, #tpu.memory_space<vmem>>, vector<8x256xf32>
    %c0_3 = arith.constant 0 : index
    %c0_4 = arith.constant 0 : index
    %2 = vector.load %arg3[%c0_3, %c0_4] : memref<8x256xf32, #tpu.memory_space<vmem>>, vector<8x256xf32>
    %c0_5 = arith.constant 0 : index
    %c0_6 = arith.constant 0 : index
    %3 = vector.load %arg4[%c0_5, %c0_6] : memref<8x256xf32, #tpu.memory_space<vmem>>, vector<8x256xf32>
    %cst = arith.constant 5.000000e-01 : f32
    %4 = vector.broadcast %cst : f32 to vector<8x256xf32>
    %5 = arith.cmpf ogt, %3, %4 : vector<8x256xf32>
    %6 = tpu.iota {dimensions = array<i32: 1>} : vector<8x256xi32>
    %c4_i32 = arith.constant 4 : i32
    %7 = vector.broadcast %c4_i32 : i32 to vector<8x256xi32>
    %8 = arith.shrsi %6, %7 : vector<8x256xi32>
    %c15_i32 = arith.constant 15 : i32
    %9 = vector.broadcast %c15_i32 : i32 to vector<8x256xi32>
    %10 = arith.andi %6, %9 : vector<8x256xi32>
    %cst_7 = arith.constant 5.000000e-01 : f32
    %11 = vector.broadcast %cst_7 : f32 to vector<8x256xf32>
    %12 = arith.cmpf ogt, %2, %11 : vector<8x256xf32>
    %c256_i32 = arith.constant 256 : i32
    %13 = vector.broadcast %c256_i32 : i32 to vector<8x256xi32>
    %14 = arith.select %12, %6, %13 : vector<8x256xi1>, vector<8x256xi32>
    %cst_8 = arith.constant dense<2147483647> : vector<8xi32>
    %15 = vector.multi_reduction <minsi>, %14, %cst_8 [1] : vector<8x256xi32> to vector<8xi32>
    %16 = vector.shape_cast %15 : vector<8xi32> to vector<8x1xi32>
    %c4_i32_9 = arith.constant 4 : i32
    %17 = vector.broadcast %c4_i32_9 : i32 to vector<8x1xi32>
    %18 = arith.shrsi %16, %17 : vector<8x1xi32>
    %c15_i32_10 = arith.constant 15 : i32
    %19 = vector.broadcast %c15_i32_10 : i32 to vector<8x1xi32>
    %20 = arith.andi %16, %19 : vector<8x1xi32>
    %21 = vector.broadcast %18 : vector<8x1xi32> to vector<8x256xi32>
    %22 = arith.subi %8, %21 : vector<8x256xi32>
    %23 = math.absi %22 : vector<8x256xi32>
    %24 = arith.sitofp %23 : vector<8x256xi32> to vector<8x256xf32>
    %25 = vector.broadcast %20 : vector<8x1xi32> to vector<8x256xi32>
    %26 = arith.subi %10, %25 : vector<8x256xi32>
    %27 = math.absi %26 : vector<8x256xi32>
    %28 = arith.sitofp %27 : vector<8x256xi32> to vector<8x256xf32>
    %29 = arith.addf %24, %28 : vector<8x256xf32>
    %30 = arith.minimumf %24, %28 : vector<8x256xf32>
    %31 = arith.subf %29, %30 : vector<8x256xf32>
    %32 = arith.mulf %24, %24 : vector<8x256xf32>
    %33 = arith.mulf %28, %28 : vector<8x256xf32>
    %34 = arith.addf %32, %33 : vector<8x256xf32>
    %35 = math.sqrt %34 : vector<8x256xf32>
    %cst_11 = arith.constant 1.000000e-03 : f32
    %36 = vector.broadcast %cst_11 : f32 to vector<8x256xf32>
    %37 = arith.mulf %36, %35 : vector<8x256xf32>
    %38 = arith.addf %31, %37 : vector<8x256xf32>
    %cst_12 = arith.constant 5.000000e-01 : f32
    %39 = vector.broadcast %cst_12 : f32 to vector<8x256xf32>
    %40 = arith.mulf %39, %38 : vector<8x256xf32>
    %c0_i32 = arith.constant 0 : i32
    %41 = vector.broadcast %c0_i32 : i32 to vector<8x256xi32>
    %42 = vector.broadcast %16 : vector<8x1xi32> to vector<8x256xi32>
    %43 = arith.addi %41, %42 : vector<8x256xi32>
    %cst_13 = arith.constant 0.000000e+00 : f32
    %44 = vector.broadcast %cst_13 : f32 to vector<8x256xf32>
    %cst_14 = arith.constant 0.000000e+00 : f32
    %45 = vector.broadcast %cst_14 : f32 to vector<8x256xf32>
    %cst_15 = arith.constant 1.000000e+30 : f32
    %cst_16 = arith.constant 0.000000e+00 : f32
    %cst_17 = arith.constant 1.000000e+00 : f32
    %c0_i32_18 = arith.constant 0 : i32
    %c0_i32_19 = arith.constant 0 : i32
    %46:6 = scf.while (%arg8 = %c0_i32_18, %arg9 = %c0_i32_19, %arg10 = %1, %arg11 = %44, %arg12 = %45, %arg13 = %43) : (i32, i32, vector<8x256xf32>, vector<8x256xf32>, vector<8x256xf32>, vector<8x256xi32>) -> (i32, i32, vector<8x256xf32>, vector<8x256xf32>, vector<8x256xf32>, vector<8x256xi32>) {
      %c256_i32_32 = arith.constant 256 : i32
      %62 = arith.cmpi slt, %arg8, %c256_i32_32 : i32
      %c0_i32_33 = arith.constant 0 : i32
      %63 = arith.cmpi eq, %arg9, %c0_i32_33 : i32
      %64 = arith.andi %62, %63 : i1
      scf.condition(%64) %arg8, %arg9, %arg10, %arg11, %arg12, %arg13 : i32, i32, vector<8x256xf32>, vector<8x256xf32>, vector<8x256xf32>, vector<8x256xi32>
    } do {
    ^bb0(%arg8: i32, %arg9: i32, %arg10: vector<8x256xf32>, %arg11: vector<8x256xf32>, %arg12: vector<8x256xf32>, %arg13: vector<8x256xi32>):
      %cst_32 = arith.constant 5.000000e-01 : f32
      %62 = vector.broadcast %cst_32 : f32 to vector<8x256xf32>
      %63 = arith.cmpf ogt, %arg10, %62 : vector<8x256xf32>
      %cst_33 = arith.constant 5.000000e-01 : f32
      %64 = vector.broadcast %cst_33 : f32 to vector<8x256xf32>
      %65 = arith.cmpf ogt, %arg11, %64 : vector<8x256xf32>
      %cst_34 = arith.constant 5.000000e-01 : f32
      %66 = vector.broadcast %cst_34 : f32 to vector<8x256xf32>
      %67 = arith.mulf %arg12, %66 : vector<8x256xf32>
      %68 = arith.addf %67, %40 : vector<8x256xf32>
      %69 = vector.broadcast %cst_15 : f32 to vector<8x256xf32>
      %70 = arith.select %63, %68, %69 : vector<8x256xi1>, vector<8x256xf32>
      %cst_35 = arith.constant dense<0x7F800000> : vector<8xf32>
      %71 = vector.multi_reduction <minimumf>, %70, %cst_35 [1] : vector<8x256xf32> to vector<8xf32>
      %72 = vector.shape_cast %71 : vector<8xf32> to vector<8x1xf32>
      %73 = vector.broadcast %72 : vector<8x1xf32> to vector<8x256xf32>
      %74 = arith.cmpf oeq, %70, %73 : vector<8x256xf32>
      %c256_i32_36 = arith.constant 256 : i32
      %75 = vector.broadcast %c256_i32_36 : i32 to vector<8x256xi32>
      %76 = arith.select %74, %6, %75 : vector<8x256xi1>, vector<8x256xi32>
      %cst_37 = arith.constant dense<2147483647> : vector<8xi32>
      %77 = vector.multi_reduction <minsi>, %76, %cst_37 [1] : vector<8x256xi32> to vector<8xi32>
      %78 = vector.shape_cast %77 : vector<8xi32> to vector<8x1xi32>
      %79 = vector.broadcast %78 : vector<8x1xi32> to vector<8x256xi32>
      %80 = arith.cmpi eq, %6, %79 : vector<8x256xi32>
      %81 = arith.cmpi ne, %78, %16 : vector<8x1xi32>
      %82 = arith.ori %65, %80 : vector<8x256xi1>
      %83 = vector.broadcast %81 : vector<8x1xi1> to vector<8x256xi1>
      %84 = arith.andi %80, %83 : vector<8x256xi1>
      %cst_38 = arith.constant dense<true> : vector<8x256xi1>
      %85 = arith.xori %84, %cst_38 : vector<8x256xi1>
      %86 = arith.andi %63, %85 : vector<8x256xi1>
      %c4_i32_39 = arith.constant 4 : i32
      %87 = vector.broadcast %c4_i32_39 : i32 to vector<8x1xi32>
      %88 = arith.shrsi %78, %87 : vector<8x1xi32>
      %c15_i32_40 = arith.constant 15 : i32
      %89 = vector.broadcast %c15_i32_40 : i32 to vector<8x1xi32>
      %90 = arith.andi %78, %89 : vector<8x1xi32>
      %91 = vector.broadcast %88 : vector<8x1xi32> to vector<8x256xi32>
      %92 = arith.subi %8, %91 : vector<8x256xi32>
      %93 = math.absi %92 : vector<8x256xi32>
      %c1_i32_41 = arith.constant 1 : i32
      %94 = vector.broadcast %c1_i32_41 : i32 to vector<8x256xi32>
      %95 = arith.cmpi sle, %93, %94 : vector<8x256xi32>
      %96 = vector.broadcast %90 : vector<8x1xi32> to vector<8x256xi32>
      %97 = arith.subi %10, %96 : vector<8x256xi32>
      %98 = math.absi %97 : vector<8x256xi32>
      %c1_i32_42 = arith.constant 1 : i32
      %99 = vector.broadcast %c1_i32_42 : i32 to vector<8x256xi32>
      %100 = arith.cmpi sle, %98, %99 : vector<8x256xi32>
      %101 = arith.andi %95, %100 : vector<8x256xi1>
      %cst_43 = arith.constant dense<true> : vector<8x256xi1>
      %102 = arith.xori %80, %cst_43 : vector<8x256xi1>
      %103 = arith.andi %101, %102 : vector<8x256xi1>
      %104 = arith.andi %103, %5 : vector<8x256xi1>
      %105 = arith.addf %arg12, %0 : vector<8x256xf32>
      %106 = vector.broadcast %cst_16 : f32 to vector<8x256xf32>
      %107 = arith.select %80, %105, %106 : vector<8x256xi1>, vector<8x256xf32>
      %cst_44 = arith.constant dense<0.000000e+00> : vector<8xf32>
      %108 = vector.multi_reduction <add>, %107, %cst_44 [1] : vector<8x256xf32> to vector<8xf32>
      %109 = vector.shape_cast %108 : vector<8xf32> to vector<8x1xf32>
      %cst_45 = arith.constant dense<true> : vector<8x256xi1>
      %110 = arith.xori %86, %cst_45 : vector<8x256xi1>
      %cst_46 = arith.constant dense<true> : vector<8x256xi1>
      %111 = arith.xori %82, %cst_46 : vector<8x256xi1>
      %112 = arith.andi %110, %111 : vector<8x256xi1>
      %113 = vector.broadcast %109 : vector<8x1xf32> to vector<8x256xf32>
      %114 = arith.cmpf ogt, %arg12, %113 : vector<8x256xf32>
      %115 = arith.andi %86, %114 : vector<8x256xi1>
      %116 = arith.ori %112, %115 : vector<8x256xi1>
      %117 = arith.andi %116, %104 : vector<8x256xi1>
      %118 = vector.shape_cast %109 : vector<8x1xf32> to vector<8x1xf32>
      %119 = vector.broadcast %118 : vector<8x1xf32> to vector<8x256xf32>
      %120 = arith.select %117, %119, %arg12 : vector<8x256xi1>, vector<8x256xf32>
      %121 = arith.ori %86, %117 : vector<8x256xi1>
      %122 = vector.shape_cast %78 : vector<8x1xi32> to vector<8x1xi32>
      %123 = vector.broadcast %122 : vector<8x1xi32> to vector<8x256xi32>
      %124 = arith.select %117, %123, %arg13 : vector<8x256xi1>, vector<8x256xi32>
      %125 = vector.broadcast %cst_17 : f32 to vector<8x1xf32>
      %126 = vector.broadcast %cst_16 : f32 to vector<8x1xf32>
      %127 = arith.select %81, %125, %126 : vector<8x1xi1>, vector<8x1xf32>
      %128 = vector.shape_cast %127 : vector<8x1xf32> to vector<1x8x1xf32>
      %cst_47 = arith.constant dense<0xFF800000> : vector<1xf32>
      %129 = vector.multi_reduction <maximumf>, %128, %cst_47 [1, 2] : vector<1x8x1xf32> to vector<1xf32>
      %130 = vector.shape_cast %129 : vector<1xf32> to vector<1x1x1xf32>
      %131 = vector.extract %130[0, 0, 0] : f32 from vector<1x1x1xf32>
      %cst_48 = arith.constant 5.000000e-01 : f32
      %132 = arith.cmpf olt, %131, %cst_48 : f32
      %133 = arith.extui %132 : i1 to i32
      %c1_i32_49 = arith.constant 1 : i32
      %134 = arith.addi %arg8, %c1_i32_49 : i32
      %135 = vector.broadcast %cst_17 : f32 to vector<8x256xf32>
      %136 = vector.broadcast %cst_16 : f32 to vector<8x256xf32>
      %137 = arith.select %121, %135, %136 : vector<8x256xi1>, vector<8x256xf32>
      %138 = vector.broadcast %cst_17 : f32 to vector<8x256xf32>
      %139 = vector.broadcast %cst_16 : f32 to vector<8x256xf32>
      %140 = arith.select %82, %138, %139 : vector<8x256xi1>, vector<8x256xf32>
      scf.yield %134, %133, %137, %140, %120, %124 : i32, i32, vector<8x256xf32>, vector<8x256xf32>, vector<8x256xf32>, vector<8x256xi32>
    }
    %c1_i32 = arith.constant 1 : i32
    %47 = arith.subi %46#0, %c1_i32 : i32
    %48 = arith.sitofp %46#5 : vector<8x256xi32> to vector<8x256xf32>
    %cst_20 = arith.constant 5.000000e-01 : f32
    %49 = vector.broadcast %cst_20 : f32 to vector<8x256xf32>
    %50 = arith.cmpf ogt, %2, %49 : vector<8x256xf32>
    %51 = arith.extui %50 : vector<8x256xi1> to vector<8x256xi32>
    %c0_i32_21 = arith.constant 0 : i32
    %52 = vector.broadcast %c0_i32_21 : i32 to vector<8x256xi32>
    %cst_22 = arith.constant 0.000000e+00 : f32
    %53 = vector.broadcast %cst_22 : f32 to vector<8x256xf32>
    %54 = arith.select %50, %48, %53 : vector<8x256xi1>, vector<8x256xf32>
    %cst_23 = arith.constant dense<0.000000e+00> : vector<8xf32>
    %55 = vector.multi_reduction <add>, %54, %cst_23 [1] : vector<8x256xf32> to vector<8xf32>
    %56 = vector.shape_cast %55 : vector<8xf32> to vector<8x1xf32>
    %57 = arith.fptosi %56 : vector<8x1xf32> to vector<8x1xi32>
    %cst_24 = arith.constant 0.000000e+00 : f32
    %c0_i32_25 = arith.constant 0 : i32
    %58:5 = scf.while (%arg8 = %c0_i32_25, %arg9 = %51, %arg10 = %52, %arg11 = %57, %arg12 = %16) : (i32, vector<8x256xi32>, vector<8x256xi32>, vector<8x1xi32>, vector<8x1xi32>) -> (i32, vector<8x256xi32>, vector<8x256xi32>, vector<8x1xi32>, vector<8x1xi32>) {
      %62 = arith.cmpi slt, %arg8, %47 : i32
      scf.condition(%62) %arg8, %arg9, %arg10, %arg11, %arg12 : i32, vector<8x256xi32>, vector<8x256xi32>, vector<8x1xi32>, vector<8x1xi32>
    } do {
    ^bb0(%arg8: i32, %arg9: vector<8x256xi32>, %arg10: vector<8x256xi32>, %arg11: vector<8x1xi32>, %arg12: vector<8x1xi32>):
      %62 = vector.broadcast %arg11 : vector<8x1xi32> to vector<8x256xi32>
      %63 = arith.cmpi eq, %6, %62 : vector<8x256xi32>
      %c1_i32_32 = arith.constant 1 : i32
      %64 = vector.broadcast %c1_i32_32 : i32 to vector<8x256xi32>
      %65 = arith.select %63, %64, %arg9 : vector<8x256xi1>, vector<8x256xi32>
      %66 = vector.shape_cast %arg12 : vector<8x1xi32> to vector<8x1xi32>
      %67 = vector.broadcast %66 : vector<8x1xi32> to vector<8x256xi32>
      %68 = arith.select %63, %67, %arg10 : vector<8x256xi1>, vector<8x256xi32>
      %69 = vector.broadcast %cst_24 : f32 to vector<8x256xf32>
      %70 = arith.select %63, %48, %69 : vector<8x256xi1>, vector<8x256xf32>
      %cst_33 = arith.constant dense<0.000000e+00> : vector<8xf32>
      %71 = vector.multi_reduction <add>, %70, %cst_33 [1] : vector<8x256xf32> to vector<8xf32>
      %72 = vector.shape_cast %71 : vector<8xf32> to vector<8x1xf32>
      %73 = arith.fptosi %72 : vector<8x1xf32> to vector<8x1xi32>
      %c1_i32_34 = arith.constant 1 : i32
      %74 = arith.addi %arg8, %c1_i32_34 : i32
      scf.yield %74, %65, %68, %73, %arg11 : i32, vector<8x256xi32>, vector<8x256xi32>, vector<8x1xi32>, vector<8x1xi32>
    }
    %c0_26 = arith.constant 0 : index
    %c0_27 = arith.constant 0 : index
    %59 = vector.load %arg5[%c0_26, %c0_27] : memref<8x256xf32, #tpu.memory_space<vmem>>, vector<8x256xf32>
    tpu.vector_store %arg5[%c0_26, %c0_27], %46#3 {strides = array<i32>} : memref<8x256xf32, #tpu.memory_space<vmem>>, vector<8x256xf32>,
    %c0_28 = arith.constant 0 : index
    %c0_29 = arith.constant 0 : index
    %60 = vector.load %arg6[%c0_28, %c0_29] : memref<8x256xi32, #tpu.memory_space<vmem>>, vector<8x256xi32>
    tpu.vector_store %arg6[%c0_28, %c0_29], %58#1 {strides = array<i32>} : memref<8x256xi32, #tpu.memory_space<vmem>>, vector<8x256xi32>,
    %c0_30 = arith.constant 0 : index
    %c0_31 = arith.constant 0 : index
    %61 = vector.load %arg7[%c0_30, %c0_31] : memref<8x256xi32, #tpu.memory_space<vmem>>, vector<8x256xi32>
    tpu.vector_store %arg7[%c0_30, %c0_31], %58#2 {strides = array<i32>} : memref<8x256xi32, #tpu.memory_space<vmem>>, vector<8x256xi32>,
    return
  }
  func.func @transform_0(%arg0: i32) -> (i32, i32) {
    %c0_i32 = arith.constant 0 : i32
    %c0_i32_0 = arith.constant 0 : i32
    return %arg0, %c0_i32 : i32, i32
  }
  func.func @transform_1(%arg0: i32) -> (i32, i32) {
    %c0_i32 = arith.constant 0 : i32
    %c0_i32_0 = arith.constant 0 : i32
    return %arg0, %c0_i32 : i32, i32
  }
  func.func @transform_2(%arg0: i32) -> (i32, i32) {
    %c0_i32 = arith.constant 0 : i32
    %c0_i32_0 = arith.constant 0 : i32
    return %arg0, %c0_i32 : i32, i32
  }
  func.func @transform_3(%arg0: i32) -> (i32, i32) {
    %c0_i32 = arith.constant 0 : i32
    %c0_i32_0 = arith.constant 0 : i32
    return %arg0, %c0_i32 : i32, i32
  }
  func.func @transform_4(%arg0: i32) -> (i32, i32) {
    %c0_i32 = arith.constant 0 : i32
    %c0_i32_0 = arith.constant 0 : i32
    return %arg0, %c0_i32 : i32, i32
  }
  func.func @transform_5(%arg0: i32) -> (i32, i32) {
    %c0_i32 = arith.constant 0 : i32
    %c0_i32_0 = arith.constant 0 : i32
    return %arg0, %c0_i32 : i32, i32
  }
  func.func @transform_6(%arg0: i32) -> (i32, i32) {
    %c0_i32 = arith.constant 0 : i32
    %c0_i32_0 = arith.constant 0 : i32
    return %arg0, %c0_i32 : i32, i32
  }
}

</mosaic_0001>

<llo_original>
// kernel: tpu_custom_call.1
$region0: #{tpu_custom_call.1}
  #allocation0 [shape = 'u32[]', space=smem, size = 0x4, offset = 0x4, fixed_abs, tag = 'smem constant byte address 0x4 - core index']
  #allocation1 [shape = 'u32[144,128]{1,0:T(1,128)}', space=vmem, size = 0x12000, scoped, tag = 'internal scratch']
  %s0 = inlined_call_operand.hbm [shape: f32[16,256], index: 0, kind: input, shape index: {}]
  %s1 = inlined_call_operand.hbm [shape: f32[16,256], index: 1, kind: input, shape index: {}]
  %s2 = inlined_call_operand.hbm [shape: f32[16,256], index: 2, kind: input, shape index: {}]
  %s3 = inlined_call_operand.hbm [shape: f32[16,256], index: 3, kind: input, shape index: {}]
  %s4 = inlined_call_operand.hbm [shape: f32[16,256], index: 4, kind: output, shape index: {0}]
  %s5 = inlined_call_operand.hbm [shape: s32[16,256], index: 5, kind: output, shape index: {1}]
  %s6 = inlined_call_operand.hbm [shape: s32[16,256], index: 6, kind: output, shape index: {2}]
  %7 = xla_tuple %s4, %s5, %s6
  %s8 = sld [smem:[#allocation0]]
  $region95: #{tpu_custom_call.1} parent=0
    _
  %s10 = ssub.s32 1, %s8
  %s11 = scalar_select 0, %s10, %s8
  $region1: #{tpu_custom_call.1} parent=0
    #allocation2 [shape = 'u8[16384]{0}', space=vmem, size = 0x4000, scoped, tag = 'input window, operand 0']
    #allocation3 [shape = 's32[2]{0}', space=sflag, size = 0x8, scoped, tag = 'scoped memory for tpu_custom_call.1']
    #allocation4 [shape = 's32[2]{0}', space=sflag, size = 0x8, scoped, tag = 'scoped memory for tpu_custom_call.1']
    #allocation5 [shape = 'u8[16384]{0}', space=vmem, size = 0x4000, scoped, tag = 'input window, operand 1']
    #allocation6 [shape = 's32[2]{0}', space=sflag, size = 0x8, scoped, tag = 'scoped memory for tpu_custom_call.1']
    #allocation7 [shape = 'u8[16384]{0}', space=vmem, size = 0x4000, scoped, tag = 'input window, operand 2']
    #allocation8 [shape = 'u8[16384]{0}', space=vmem, size = 0x4000, scoped, tag = 'input window, operand 3']
    #allocation9 [shape = 's32[2]{0}', space=sflag, size = 0x8, scoped, tag = 'scoped memory for tpu_custom_call.1']
    #allocation10 [shape = 'u8[16384]{0}', space=vmem, size = 0x4000, scoped, tag = 'output window, operand 0']
    #allocation11 [shape = 'u8[16384]{0}', space=vmem, size = 0x4000, scoped, tag = 'output window, operand 1']
    #allocation12 [shape = 's32[2]{0}', space=sflag, size = 0x8, scoped, tag = 'scoped memory for tpu_custom_call.1']
    #allocation13 [shape = 'u8[16384]{0}', space=vmem, size = 0x4000, scoped, tag = 'output window, operand 2']
    %12 = vsyncpa [#allocation3], 0
    %s13 = scalar_lea.sflag [#allocation3], 1
    %14 = vsyncpa %s13, 0
    %15 = vsyncpa [#allocation6], 0
    %s16 = scalar_lea.sflag [#allocation6], 1
    %17 = vsyncpa %s16, 0
    %18 = vsyncpa [#allocation9], 0
    %s19 = scalar_lea.sflag [#allocation9], 1
    %20 = vsyncpa %s19, 0
    %21 = vsyncpa [#allocation4], 0
    %s22 = scalar_lea.sflag [#allocation4], 1
    %23 = vsyncpa %s22, 0
    %24 = vsyncpa [#allocation12], 0
    %s25 = scalar_lea.sflag [#allocation12], 1
    %26 = vsyncpa %s25, 0
    loop: start=0, step=1, limit=4
    $region2: #{tpu_custom_call.1} parent=1 // loop_pre_header
      _
    $region3: #{tpu_custom_call.1} parent=1 // loop_header
      %s28 = sphi 0, %s32
      %p29 = scmp.ge.s32.totalorder %s28, 4
      %s38 = sphi 0, %s40
      %s41 = sphi 0, %s38
      %s42 = sphi 0, %s41
      %s58 = sphi 0, %s42
      %s64 = sphi 0, %s66
      %s67 = sphi 0, %s64
      %s68 = sphi 0, %s67
      %s84 = sphi 0, %s68
      %s90 = sphi 0, %s92
      %s93 = sphi 0, %s90
      %s94 = sphi 0, %s93
      %s110 = sphi 0, %s94
      %s116 = sphi 0, %s118
      %s119 = sphi 0, %s116
      %s120 = sphi 0, %s119
      %s136 = sphi 0, %s120
      %s142 = sphi 0, %s144
      %s145 = sphi 0, %s142
      %s146 = sphi 0, %s145
      %s162 = sphi 0, %s146
      %s168 = sphi 0, %s170
      %s171 = sphi 0, %s168
      %s172 = sphi 0, %s171
      %s188 = sphi 0, %s172
      %s194 = sphi 0, %s196
      %s197 = sphi 0, %s194
      %s198 = sphi 0, %s197
      %s214 = sphi 0, %s198
    $region4: #{tpu_custom_call.1} parent=1 // loop_header_branch
      %31 = sbr.rel (%p29) target = $region8
    $region5: #{tpu_custom_call.1} parent=1 // loop_body
      %s33 = ssub.s32 %s28, 1
      %s34 = ssub.s32 %s28, 2
      %s35 = sadd.s32 %s28, 1
      %s36 = ssub.s32 %s28, %s35
      %p37 = scmp.eq.s32.totalorder %s36, 0
      %s39 = sadd.s32 %s38, 1
      %s40 = scalar_select %p37, %s38, %s39
      %p43 = pneg %p37
      %p44 = scmp.eq.s32.totalorder %s28, 1
      %p45 = por %p43, %p44
      %p46 = scmp.ne.s32.totalorder %s38, %s41
      %p47 = scmp.eq.s32.totalorder %s28, 0
      %p48 = por %p46, %p47
      %p49 = scmp.ne.s32.totalorder %s38, %s41
      %p50 = scmp.eq.s32.totalorder %s33, 1
      %p51 = por %p49, %p50
      %p52 = scmp.ne.s32.totalorder %s41, %s42
      %p53 = scmp.eq.s32.totalorder %s33, 0
      %p54 = por %p52, %p53
      %p55 = scmp.ne.s32.totalorder %s41, %s42
      %p56 = scmp.eq.s32.totalorder %s34, 1
      %p57 = por %p55, %p56
      %p59 = scmp.ne.s32.totalorder %s42, %s58
      %p60 = scmp.eq.s32.totalorder %s34, 0
      %p61 = por %p59, %p60
      %s62 = ssub.s32 %s28, %s35
      %p63 = scmp.eq.s32.totalorder %s62, 0
      %s65 = sadd.s32 %s64, 1
      %s66 = scalar_select %p63, %s64, %s65
      %p69 = pneg %p63
      %p70 = scmp.eq.s32.totalorder %s28, 1
      %p71 = por %p69, %p70
      %p72 = scmp.ne.s32.totalorder %s64, %s67
      %p73 = scmp.eq.s32.totalorder %s28, 0
      %p74 = por %p72, %p73
      %p75 = scmp.ne.s32.totalorder %s64, %s67
      %p76 = scmp.eq.s32.totalorder %s33, 1
      %p77 = por %p75, %p76
      %p78 = scmp.ne.s32.totalorder %s67, %s68
      %p79 = scmp.eq.s32.totalorder %s33, 0
      %p80 = por %p78, %p79
      %p81 = scmp.ne.s32.totalorder %s67, %s68
      %p82 = scmp.eq.s32.totalorder %s34, 1
      %p83 = por %p81, %p82
      %p85 = scmp.ne.s32.totalorder %s68, %s84
      %p86 = scmp.eq.s32.totalorder %s34, 0
      %p87 = por %p85, %p86
      %s88 = ssub.s32 %s28, %s35
      %p89 = scmp.eq.s32.totalorder %s88, 0
      %s91 = sadd.s32 %s90, 1
      %s92 = scalar_select %p89, %s90, %s91
      %p95 = pneg %p89
      %p96 = scmp.eq.s32.totalorder %s28, 1
      %p97 = por %p95, %p96
      %p98 = scmp.ne.s32.totalorder %s90, %s93
      %p99 = scmp.eq.s32.totalorder %s28, 0
      %p100 = por %p98, %p99
      %p101 = scmp.ne.s32.totalorder %s90, %s93
      %p102 = scmp.eq.s32.totalorder %s33, 1
      %p103 = por %p101, %p102
      %p104 = scmp.ne.s32.totalorder %s93, %s94
      %p105 = scmp.eq.s32.totalorder %s33, 0
      %p106 = por %p104, %p105
      %p107 = scmp.ne.s32.totalorder %s93, %s94
      %p108 = scmp.eq.s32.totalorder %s34, 1
      %p109 = por %p107, %p108
      %p111 = scmp.ne.s32.totalorder %s94, %s110
      %p112 = scmp.eq.s32.totalorder %s34, 0
      %p113 = por %p111, %p112
      %s114 = ssub.s32 %s28, %s35
      %p115 = scmp.eq.s32.totalorder %s114, 0
      %s117 = sadd.s32 %s116, 1
      %s118 = scalar_select %p115, %s116, %s117
      %p121 = pneg %p115
      %p122 = scmp.eq.s32.totalorder %s28, 1
      %p123 = por %p121, %p122
      %p124 = scmp.ne.s32.totalorder %s116, %s119
      %p125 = scmp.eq.s32.totalorder %s28, 0
      %p126 = por %p124, %p125
      %p127 = scmp.ne.s32.totalorder %s116, %s119
      %p128 = scmp.eq.s32.totalorder %s33, 1
      %p129 = por %p127, %p128
      %p130 = scmp.ne.s32.totalorder %s119, %s120
      %p131 = scmp.eq.s32.totalorder %s33, 0
      %p132 = por %p130, %p131
      %p133 = scmp.ne.s32.totalorder %s119, %s120
      %p134 = scmp.eq.s32.totalorder %s34, 1
      %p135 = por %p133, %p134
      %p137 = scmp.ne.s32.totalorder %s120, %s136
      %p138 = scmp.eq.s32.totalorder %s34, 0
      %p139 = por %p137, %p138
      %s140 = ssub.s32 %s28, %s35
      %p141 = scmp.eq.s32.totalorder %s140, 0
      %s143 = sadd.s32 %s142, 1
      %s144 = scalar_select %p141, %s142, %s143
      %p147 = pneg %p141
      %p148 = scmp.eq.s32.totalorder %s28, 1
      %p149 = por %p147, %p148
      %p150 = scmp.ne.s32.totalorder %s142, %s145
      %p151 = scmp.eq.s32.totalorder %s28, 0
      %p152 = por %p150, %p151
      %p153 = scmp.ne.s32.totalorder %s142, %s145
      %p154 = scmp.eq.s32.totalorder %s33, 1
      %p155 = por %p153, %p154
      %p156 = scmp.ne.s32.totalorder %s145, %s146
      %p157 = scmp.eq.s32.totalorder %s33, 0
      %p158 = por %p156, %p157
      %p159 = scmp.ne.s32.totalorder %s145, %s146
      %p160 = scmp.eq.s32.totalorder %s34, 1
      %p161 = por %p159, %p160
      %p163 = scmp.ne.s32.totalorder %s146, %s162
      %p164 = scmp.eq.s32.totalorder %s34, 0
      %p165 = por %p163, %p164
      %s166 = ssub.s32 %s28, %s35
      %p167 = scmp.eq.s32.totalorder %s166, 0
      %s169 = sadd.s32 %s168, 1
      %s170 = scalar_select %p167, %s168, %s169
      %p173 = pneg %p167
      %p174 = scmp.eq.s32.totalorder %s28, 1
      %p175 = por %p173, %p174
      %p176 = scmp.ne.s32.totalorder %s168, %s171
      %p177 = scmp.eq.s32.totalorder %s28, 0
      %p178 = por %p176, %p177
      %p179 = scmp.ne.s32.totalorder %s168, %s171
      %p180 = scmp.eq.s32.totalorder %s33, 1
      %p181 = por %p179, %p180
      %p182 = scmp.ne.s32.totalorder %s171, %s172
      %p183 = scmp.eq.s32.totalorder %s33, 0
      %p184 = por %p182, %p183
      %p185 = scmp.ne.s32.totalorder %s171, %s172
      %p186 = scmp.eq.s32.totalorder %s34, 1
      %p187 = por %p185, %p186
      %p189 = scmp.ne.s32.totalorder %s172, %s188
      %p190 = scmp.eq.s32.totalorder %s34, 0
      %p191 = por %p189, %p190
      %s192 = ssub.s32 %s28, %s35
      %p193 = scmp.eq.s32.totalorder %s192, 0
      %s195 = sadd.s32 %s194, 1
      %s196 = scalar_select %p193, %s194, %s195
      %p199 = pneg %p193
      %p200 = scmp.eq.s32.totalorder %s28, 1
      %p201 = por %p199, %p200
      %p202 = scmp.ne.s32.totalorder %s194, %s197
      %p203 = scmp.eq.s32.totalorder %s28, 0
      %p204 = por %p202, %p203
      %p205 = scmp.ne.s32.totalorder %s194, %s197
      %p206 = scmp.eq.s32.totalorder %s33, 1
      %p207 = por %p205, %p206
      %p208 = scmp.ne.s32.totalorder %s197, %s198
      %p209 = scmp.eq.s32.totalorder %s33, 0
      %p210 = por %p208, %p209
      %p211 = scmp.ne.s32.totalorder %s197, %s198
      %p212 = scmp.eq.s32.totalorder %s34, 1
      %p213 = por %p211, %p212
      %p215 = scmp.ne.s32.totalorder %s198, %s214
      %p216 = scmp.eq.s32.totalorder %s34, 0
      %p217 = por %p215, %p216
      %p218 = scmp.le.s32.totalorder 1, %s28
      %p219 = scmp.lt.s32.totalorder %s28, 3
      %p220 = pnand %p218, %p219
      %p221 = pneg %p220
      // Predicated region
      $region9: #{tpu_custom_call.1} parent=5 // pred_check
        _
      $region10: #{tpu_custom_call.1} parent=5 // pred_check_branch
        %223 = sbr.rel (%p220) target = $region12
      $region11: #{tpu_custom_call.1} parent=5 // pred_region
        %s224 = ssub.s32 %s28, 1
      $region12: #{tpu_custom_call.1} parent=5 // pred_fallthru
        _
      %p225 = scmp.lt.s32.totalorder %s28, 2
      // Predicated region
      $region13: #{tpu_custom_call.1} parent=5 // pred_check
        %p226 = pneg %p225
      $region14: #{tpu_custom_call.1} parent=5 // pred_check_branch
        %228 = sbr.rel (%p226) target = $region16
      $region15: #{tpu_custom_call.1} parent=5 // pred_region
        // Predicated region
        $region17: #{tpu_custom_call.1} parent=15 // pred_check
          %p229 = pneg %p48
        $region18: #{tpu_custom_call.1} parent=15 // pred_check_branch
          %231 = sbr.rel (%p229) target = $region20
        $region19: #{tpu_custom_call.1} parent=15 // pred_region
          %s232 = sand.u32 %s38, 1
          %s233 = scalar_lea.sflag [#allocation3], %s232
          %s234 = sand.u32 %s38, 1
          %s235 = smul.addr %s234, 16
          %s236 = scalar_lea.vmem [#allocation2], %s235
          %s238 = ssub.s32 256, 256
          %239 = vsyncadd %s233, %s238
          %s240 = smul.addr %s28, 2
          %s241 = smul.addr %s240, 128
          %s242 = scalar_lea.hbm %s0, %s241
          %s244 = sshll.u32 %s236, 4
          %s245 = int_to_ptr.vmem [resolvable:$true] %s244
          %247 = dma.hbm_to_vmem [thread:$0]  %s242, 256, %s245, %s233
        $region20: #{tpu_custom_call.1} parent=15 // pred_fallthru
          _
        // Predicated region
        $region21: #{tpu_custom_call.1} parent=15 // pred_check
          %p248 = pneg %p74
        $region22: #{tpu_custom_call.1} parent=15 // pred_check_branch
          %250 = sbr.rel (%p248) target = $region24
        $region23: #{tpu_custom_call.1} parent=15 // pred_region
          %s251 = sand.u32 %s28, 1
          %s252 = scalar_lea.sflag [#allocation6], %s251
          %s253 = sand.u32 %s64, 1
          %s254 = smul.addr %s253, 16
          %s255 = scalar_lea.vmem [#allocation5], %s254
          %s257 = ssub.s32 256, 256
          %258 = vsyncadd %s252, %s257
          %s259 = smul.addr %s28, 2
          %s260 = smul.addr %s259, 128
          %s261 = scalar_lea.hbm %s1, %s260
          %s263 = sshll.u32 %s255, 4
          %s264 = int_to_ptr.vmem [resolvable:$true] %s263
          %266 = dma.hbm_to_vmem [thread:$0]  %s261, 256, %s264, %s252
        $region24: #{tpu_custom_call.1} parent=15 // pred_fallthru
          _
        // Predicated region
        $region25: #{tpu_custom_call.1} parent=15 // pred_check
          %p267 = pneg %p100
        $region26: #{tpu_custom_call.1} parent=15 // pred_check_branch
          %269 = sbr.rel (%p267) target = $region28
        $region27: #{tpu_custom_call.1} parent=15 // pred_region
          %s270 = sand.u32 %s28, 1
          %s271 = scalar_lea.sflag [#allocation6], %s270
          %s272 = sand.u32 %s90, 1
          %s273 = smul.addr %s272, 16
          %s274 = scalar_lea.vmem [#allocation7], %s273
          %s276 = ssub.s32 256, 256
          %277 = vsyncadd %s271, %s276
          %s278 = smul.addr %s28, 2
          %s279 = smul.addr %s278, 128
          %s280 = scalar_lea.hbm %s2, %s279
          %s282 = sshll.u32 %s274, 4
          %s283 = int_to_ptr.vmem [resolvable:$true] %s282
          %285 = dma.hbm_to_vmem [thread:$0]  %s280, 256, %s283, %s271
        $region28: #{tpu_custom_call.1} parent=15 // pred_fallthru
          _
        // Predicated region
        $region29: #{tpu_custom_call.1} parent=15 // pred_check
          %p286 = pneg %p126
        $region30: #{tpu_custom_call.1} parent=15 // pred_check_branch
          %288 = sbr.rel (%p286) target = $region32
        $region31: #{tpu_custom_call.1} parent=15 // pred_region
          %s289 = sand.u32 %s116, 1
          %s290 = scalar_lea.sflag [#allocation9], %s289
          %s291 = sand.u32 %s116, 1
          %s292 = smul.addr %s291, 16
          %s293 = scalar_lea.vmem [#allocation8], %s292
          %s295 = ssub.s32 256, 256
          %296 = vsyncadd %s290, %s295
          %s297 = smul.addr %s28, 2
          %s298 = smul.addr %s297, 128
          %s299 = scalar_lea.hbm %s3, %s298
          %s301 = sshll.u32 %s293, 4
          %s302 = int_to_ptr.vmem [resolvable:$true] %s301
          %304 = dma.hbm_to_vmem [thread:$0]  %s299, 256, %s302, %s290
        $region32: #{tpu_custom_call.1} parent=15 // pred_fallthru
          _
      $region16: #{tpu_custom_call.1} parent=5 // pred_fallthru
        _
      %p305 = scmp.le.s32.totalorder 1, %s28
      %p306 = scmp.lt.s32.totalorder %s28, 3
      %p307 = pnand %p305, %p306
      %p308 = pneg %p307
      // Predicated region
      $region33: #{tpu_custom_call.1} parent=5 // pred_check
        _
      $region34: #{tpu_custom_call.1} parent=5 // pred_check_branch
        %310 = sbr.rel (%p307) target = $region36
      $region35: #{tpu_custom_call.1} parent=5 // pred_region
        %s311 = ssub.s32 %s28, 1
        %s312 = sand.u32 %s41, 1
        %s313 = scalar_lea.sflag [#allocation3], %s312
        %s314 = sand.u32 %s41, 1
        %s315 = smul.addr %s314, 16
        %s316 = scalar_lea.vmem [#allocation2], %s315
        // Predicated region
        $region37: #{tpu_custom_call.1} parent=35 // pred_check
          %p317 = pneg %p54
        $region38: #{tpu_custom_call.1} parent=35 // pred_check_branch
          %319 = sbr.rel (%p317) target = $region40
        $region39: #{tpu_custom_call.1} parent=35 // pred_region
          %320 = dma.done %s313, 256
        $region40: #{tpu_custom_call.1} parent=35 // pred_fallthru
          _
        %s321 = sand.u32 %s33, 1
        %s322 = scalar_lea.sflag [#allocation6], %s321
        %s323 = sand.u32 %s67, 1
        %s324 = smul.addr %s323, 16
        %s325 = scalar_lea.vmem [#allocation5], %s324
        // Predicated region
        $region41: #{tpu_custom_call.1} parent=35 // pred_check
          %p326 = pneg %p80
        $region42: #{tpu_custom_call.1} parent=35 // pred_check_branch
          %328 = sbr.rel (%p326) target = $region44
        $region43: #{tpu_custom_call.1} parent=35 // pred_region
          %329 = dma.done %s322, 256
        $region44: #{tpu_custom_call.1} parent=35 // pred_fallthru
          _
        %s330 = sand.u32 %s33, 1
        %s331 = scalar_lea.sflag [#allocation6], %s330
        %s332 = sand.u32 %s93, 1
        %s333 = smul.addr %s332, 16
        %s334 = scalar_lea.vmem [#allocation7], %s333
        // Predicated region
        $region45: #{tpu_custom_call.1} parent=35 // pred_check
          %p335 = pneg %p106
        $region46: #{tpu_custom_call.1} parent=35 // pred_check_branch
          %337 = sbr.rel (%p335) target = $region48
        $region47: #{tpu_custom_call.1} parent=35 // pred_region
          %338 = dma.done %s331, 256
        $region48: #{tpu_custom_call.1} parent=35 // pred_fallthru
          _
        %s339 = sand.u32 %s119, 1
        %s340 = scalar_lea.sflag [#allocation9], %s339
        %s341 = sand.u32 %s119, 1
        %s342 = smul.addr %s341, 16
        %s343 = scalar_lea.vmem [#allocation8], %s342
        // Predicated region
        $region49: #{tpu_custom_call.1} parent=35 // pred_check
          %p344 = pneg %p132
        $region50: #{tpu_custom_call.1} parent=35 // pred_check_branch
          %346 = sbr.rel (%p344) target = $region52
        $region51: #{tpu_custom_call.1} parent=35 // pred_region
          %347 = dma.done %s340, 256
        $region52: #{tpu_custom_call.1} parent=35 // pred_fallthru
          _
        %s348 = sand.u32 %s41, 1
        %s349 = scalar_lea.sflag [#allocation3], %s348
        %s350 = sand.u32 %s41, 1
        %s351 = smul.addr %s350, 16
        %s352 = scalar_lea.vmem [#allocation2], %s351
        %p353 = pneg %p54
        %p354 = pneg %p51
        %s355 = sand.u32 %s33, 1
        %s356 = scalar_lea.sflag [#allocation6], %s355
        %s357 = sand.u32 %s67, 1
        %s358 = smul.addr %s357, 16
        %s359 = scalar_lea.vmem [#allocation5], %s358
        %p360 = pneg %p80
        %p361 = pneg %p77
        %s362 = sand.u32 %s33, 1
        %s363 = scalar_lea.sflag [#allocation6], %s362
        %s364 = sand.u32 %s93, 1
        %s365 = smul.addr %s364, 16
        %s366 = scalar_lea.vmem [#allocation7], %s365
        %p367 = pneg %p106
        %p368 = pneg %p103
        %s369 = sand.u32 %s119, 1
        %s370 = scalar_lea.sflag [#allocation9], %s369
        %s371 = sand.u32 %s119, 1
        %s372 = smul.addr %s371, 16
        %s373 = scalar_lea.vmem [#allocation8], %s372
        %p374 = pneg %p132
        %p375 = pneg %p129
        %p376 = pneg %p158
        %p377 = pneg %p155
        %s378 = sand.u32 %s145, 1
        %s379 = scalar_lea.sflag [#allocation4], %s378
        %s380 = sand.u32 %s145, 1
        %s381 = smul.addr %s380, 16
        %s382 = scalar_lea.vmem [#allocation10], %s381
        %p383 = pneg %p184
        %p384 = pneg %p181
        %s385 = sand.u32 %s33, 1
        %s386 = scalar_lea.sflag [#allocation12], %s385
        %s387 = sand.u32 %s171, 1
        %s388 = smul.addr %s387, 16
        %s389 = scalar_lea.vmem [#allocation11], %s388
        %p390 = pneg %p210
        %p391 = pneg %p207
        %s392 = sand.u32 %s33, 1
        %s393 = scalar_lea.sflag [#allocation12], %s392
        %s394 = sand.u32 %s197, 1
        %s395 = smul.addr %s394, 16
        %s396 = scalar_lea.vmem [#allocation13], %s395
        %v397 = vld [vmem:[%s316] sm:$0xff]
        %v398 = vld [vmem:[%s316 + $0x8] sm:$0xff]
        %v399 = vld [vmem:[%s325] sm:$0xff]
        %v400 = vld [vmem:[%s325 + $0x8] sm:$0xff]
        %v401 = vld [vmem:[%s334] sm:$0xff]
        %v402 = vld [vmem:[%s334 + $0x8] sm:$0xff]
        %v403 = vld [vmem:[%s343] sm:$0xff]
        %v404 = vld [vmem:[%s343 + $0x8] sm:$0xff]
        %vm405 = vcmp.gt.f32.partialorder %v403, 0.5
        %vm406 = vcmp.gt.f32.partialorder %v404, 0.5
        %v407 = vlaneseq
        %v408 = vand.u32 %v407, 127
        %v409 = vadd.s32 %v408, 128
        %v410 = vshra.s32 %v408, 4
        %v411 = vshra.s32 %v409, 4
        %v412 = vand.u32 %v408, 15
        %v413 = vand.u32 %v409, 15
        %vm414 = vcmp.gt.f32.partialorder %v401, 0.5
        %vm415 = vcmp.gt.f32.partialorder %v402, 0.5
        %v416 = vsel %vm414, %v408, 256
        %v417 = vsel %vm415, %v409, 256
        %vm418 = vcmp.lt.s32.totalorder %v416, %v417
        %v419 = vsel %vm418, %v416, %v417
        %v420 = vand.u32 %v419, 65535
        %v421 = vshra.s32 %v419, 16
        %v422 = vcvt.s32.f32 %v420
        %v423 = vcvt.s32.f32 %v421
        %424 = vmin.xlane.f32.xlu0 %v423
        %v425 = vpop.xlane.xlu0 %424
        %vm426 = vcmp.eq.f32.partialorder %v423, %v425
        %v427 = vsel %vm426, %v422, inf
        %428 = vmin.xlane.f32.xlu0 %v427
        %v429 = vpop.xlane.xlu0 %428
        %v430 = vcvt.f32.s32 %v429
        %v431 = vcvt.f32.s32 %v425
        %v432 = vshll.u32 %v431, 16
        %v433 = vadd.s32 %v432, %v430
        %v434 = vshra.s32 %v433, 4
        %v435 = vand.u32 %v433, 15
        %v436 = vsub.s32 %v410, %v434
        %v437 = vsub.s32 %v411, %v434
        %vm438 = vcmp.lt.s32.totalorder %v436, 0
        %v439 = vsub.s32 0, %v436
        %v440 = vsel %vm438, %v439, %v436
        %vm441 = vcmp.lt.s32.totalorder %v437, 0
        %v442 = vsub.s32 0, %v437
        %v443 = vsel %vm441, %v442, %v437
        %v444 = vcvt.s32.f32 %v440
        %v445 = vcvt.s32.f32 %v443
        %v446 = vsub.s32 %v412, %v435
        %v447 = vsub.s32 %v413, %v435
        %vm448 = vcmp.lt.s32.totalorder %v446, 0
        %v449 = vsub.s32 0, %v446
        %v450 = vsel %vm448, %v449, %v446
        %vm451 = vcmp.lt.s32.totalorder %v447, 0
        %v452 = vsub.s32 0, %v447
        %v453 = vsel %vm451, %v452, %v447
        %v454 = vcvt.s32.f32 %v450
        %v455 = vcvt.s32.f32 %v453
        %v456 = vadd.f32 %v444, %v454
        %v457 = vadd.f32 %v445, %v455
        %v458 = vmin.f32 %v444, %v454
        %v459 = vmin.f32 %v445, %v455
        %v460 = vsub.f32 %v456, %v458
        %v461 = vsub.f32 %v457, %v459
        %v462 = vmul.f32 %v444, %v444
        %v463 = vmul.f32 %v445, %v445
        %v464 = vmul.f32 %v454, %v454
        %v465 = vmul.f32 %v455, %v455
        %v466 = vadd.f32 %v462, %v464
        %v467 = vadd.f32 %v463, %v465
        %v468 = vrsqrt.pop %v466
        %v469 = vmul.f32 %v466, %v468
        %vm470 = vcmp.eq.f32.partialorder %v466, inf
        %v471 = vsel %vm470, %v466, %v469
        %vm472 = vcmp.eq.f32.partialorder %v466, 0.0
        %v473 = vand.u32 %v466, 2147483648
        %v474 = vsel %vm472, %v473, %v471
        %v475 = vrsqrt.pop %v467
        %v476 = vmul.f32 %v467, %v475
        %vm477 = vcmp.eq.f32.partialorder %v467, inf
        %v478 = vsel %vm477, %v467, %v476
        %vm479 = vcmp.eq.f32.partialorder %v467, 0.0
        %v480 = vand.u32 %v467, 2147483648
        %v481 = vsel %vm479, %v480, %v478
        %v482 = vmul.f32 %v474, 0.001
        %v483 = vmul.f32 %v481, 0.001
        %v484 = vadd.f32 %v460, %v482
        %v485 = vadd.f32 %v461, %v483
        %v486 = vmul.f32 %v484, 0.5
        %v487 = vmul.f32 %v485, 0.5
        // While loop
        $region53: #{tpu_custom_call.1} parent=35 // loop_pre_header
          _
        $region54: #{tpu_custom_call.1} parent=35 // loop_header
          %s489 = sphi 0, %s618
          %s490 = sphi 0, %s617
          %v491 = vphi %v399, %v619
          %v492 = vphi %v400, %v620
          %v493 = vphi 0.0, %v621
          %v494 = vphi 0.0, %v622
          %v495 = vphi 0.0, %v602
          %v496 = vphi 0.0, %v603
          %v497 = vphi %v433, %v606
          %v498 = vphi %v433, %v607
          %p499 = scmp.lt.s32.totalorder %s489, 256
          %p500 = scmp.eq.s32.totalorder %s490, 0
          %p501 = pnand %p499, %p500
          %p502 = pneg %p501
        $region55: #{tpu_custom_call.1} parent=35 // loop_header_branch
          %504 = sbr.rel (%p501) target = $region59
        $region56: #{tpu_custom_call.1} parent=35 // loop_body
          %vm505 = vcmp.gt.f32.partialorder %v491, 0.5
          %vm506 = vcmp.gt.f32.partialorder %v492, 0.5
          %vm507 = vcmp.gt.f32.partialorder %v493, 0.5
          %vm508 = vcmp.gt.f32.partialorder %v494, 0.5
          %v509 = vmul.f32 %v495, 0.5
          %v510 = vmul.f32 %v496, 0.5
          %v511 = vadd.f32 %v509, %v486
          %v512 = vadd.f32 %v510, %v487
          %v513 = vsel %vm505, %v511, 1e+30
          %v514 = vsel %vm506, %v512, 1e+30
          %v515 = vmin.f32 %v513, %v514
          %516 = vmin.xlane.f32.xlu0 %v515
          %v517 = vpop.xlane.xlu0 %516
          %vm518 = vcmp.eq.f32.partialorder %v513, %v517
          %vm519 = vcmp.eq.f32.partialorder %v514, %v517
          %v520 = vsel %vm518, %v408, 256
          %v521 = vsel %vm519, %v409, 256
          %vm522 = vcmp.lt.s32.totalorder %v520, %v521
          %v523 = vsel %vm522, %v520, %v521
          %v524 = vand.u32 %v523, 65535
          %v525 = vshra.s32 %v523, 16
          %v526 = vcvt.s32.f32 %v524
          %v527 = vcvt.s32.f32 %v525
          %528 = vmin.xlane.f32.xlu0 %v527
          %v529 = vpop.xlane.xlu0 %528
          %vm530 = vcmp.eq.f32.partialorder %v527, %v529
          %v531 = vsel %vm530, %v526, inf
          %532 = vmin.xlane.f32.xlu0 %v531
          %v533 = vpop.xlane.xlu0 %532
          %v534 = vcvt.f32.s32 %v533
          %v535 = vcvt.f32.s32 %v529
          %v536 = vshll.u32 %v535, 16
          %v537 = vadd.s32 %v536, %v534
          %vm538 = vcmp.eq.s32.totalorder %v408, %v537
          %vm539 = vcmp.eq.s32.totalorder %v409, %v537
          %vm540 = vcmp.ne.s32.totalorder %v537, %v433
          %vm541 = vmor %vm507, %vm538
          %vm542 = vmor %vm508, %vm539
          %v543 = vsel %vm540, 1, 0
          %vm544 = vcmp.eq.s32.totalorder %v543, 1
          %vm545 = vmand %vm538, %vm544
          %vm546 = vmand %vm539, %vm544
          %vm547 = vmxor %vm545, 1
          %vm548 = vmxor %vm546, 1
          %vm549 = vmand %vm505, %vm547
          %vm550 = vmand %vm506, %vm548
          %v551 = vshra.s32 %v537, 4
          %v552 = vand.u32 %v537, 15
          %v553 = vsub.s32 %v410, %v551
          %v554 = vsub.s32 %v411, %v551
          %vm555 = vcmp.lt.s32.totalorder %v553, 0
          %v556 = vsub.s32 0, %v553
          %v557 = vsel %vm555, %v556, %v553
          %vm558 = vcmp.lt.s32.totalorder %v554, 0
          %v559 = vsub.s32 0, %v554
          %v560 = vsel %vm558, %v559, %v554
          %vm561 = vcmp.le.s32.totalorder %v557, 1
          %vm562 = vcmp.le.s32.totalorder %v560, 1
          %v563 = vsub.s32 %v412, %v552
          %v564 = vsub.s32 %v413, %v552
          %vm565 = vcmp.lt.s32.totalorder %v563, 0
          %v566 = vsub.s32 0, %v563
          %v567 = vsel %vm565, %v566, %v563
          %vm568 = vcmp.lt.s32.totalorder %v564, 0
          %v569 = vsub.s32 0, %v564
          %v570 = vsel %vm568, %v569, %v564
          %vm571 = vcmp.le.s32.totalorder %v567, 1
          %vm572 = vcmp.le.s32.totalorder %v570, 1
          %vm573 = vmand %vm561, %vm571
          %vm574 = vmand %vm562, %vm572
          %vm575 = vmxor %vm538, 1
          %vm576 = vmxor %vm539, 1
          %vm577 = vmand %vm573, %vm575
          %vm578 = vmand %vm574, %vm576
          %vm579 = vmand %vm577, %vm405
          %vm580 = vmand %vm578, %vm406
          %v581 = vadd.f32 %v495, %v397
          %v582 = vadd.f32 %v496, %v398
          %v583 = vsel %vm538, %v581, 0.0
          %v584 = vsel %vm539, %v582, 0.0
          %v585 = vadd.f32 %v583, %v584
          %586 = vadd.xlane.f32.xlu0 %v585
          %v587 = vpop.xlane.xlu0 %586
          %vm588 = vmxor %vm549, 1
          %vm589 = vmxor %vm550, 1
          %vm590 = vmxor %vm541, 1
          %vm591 = vmxor %vm542, 1
          %vm592 = vmand %vm588, %vm590
          %vm593 = vmand %vm589, %vm591
          %vm594 = vcmp.gt.f32.partialorder %v495, %v587
          %vm595 = vcmp.gt.f32.partialorder %v496, %v587
          %vm596 = vmand %vm549, %vm594
          %vm597 = vmand %vm550, %vm595
          %vm598 = vmor %vm592, %vm596
          %vm599 = vmor %vm593, %vm597
          %vm600 = vmand %vm598, %vm579
          %vm601 = vmand %vm599, %vm580
          %v602 = vsel %vm600, %v587, %v495
          %v603 = vsel %vm601, %v587, %v496
          %vm604 = vmor %vm549, %vm600
          %vm605 = vmor %vm550, %vm601
          %v606 = vsel %vm600, %v537, %v497
          %v607 = vsel %vm601, %v537, %v498
          %v608 = vsel %vm540, 1.0, 0.0
          %v609 = vrot.slane %v608, 4
          %v610 = vmax.f32 %v608, %v609
          %v611 = vrot.slane %v610, 2
          %v612 = vmax.f32 %v610, %v611
          %v613 = vrot.slane %v612, 1
          %v614 = vmax.f32 %v612, %v613
          %s615 = vtos %v614
          %p616 = scmp.lt.f32.partialorder %s615, 0.5
          %s617 = scalar_select %p616, 1, 0
          %s618 = sadd.s32 %s489, 1
          %v619 = vsel %vm604, 1.0, 0.0
          %v620 = vsel %vm605, 1.0, 0.0
          %v621 = vsel %vm541, 1.0, 0.0
          %v622 = vsel %vm542, 1.0, 0.0
        $region57: #{tpu_custom_call.1} parent=35 // loop_footer
          _
        $region58: #{tpu_custom_call.1} parent=35 // loop_footer_branch
          %488 = sbr.rel target = $region54
        $region59: #{tpu_custom_call.1} parent=35 // loop_exit
          _
        %s623 = ssub.s32 %s489, 1
        %v624 = vcvt.s32.f32 %v497
        %v625 = vcvt.s32.f32 %v498
        %v626 = vsel %vm414, 1, 0
        %v627 = vsel %vm415, 1, 0
        %v628 = vsel %vm414, %v624, 0.0
        %v629 = vsel %vm415, %v625, 0.0
        %v630 = vadd.f32 %v628, %v629
        %631 = vadd.xlane.f32.xlu0 %v630
        %v632 = vpop.xlane.xlu0 %631
        %v633 = vcvt.f32.s32.to.zero.pseudo %v632
        // While loop
        $region60: #{tpu_custom_call.1} parent=35 // loop_pre_header
          _
        $region61: #{tpu_custom_call.1} parent=35 // loop_header
          %s635 = sphi 0, %s658
          %v636 = vphi %v626, %v648
          %v637 = vphi %v627, %v649
          %v638 = vphi 0, %v650
          %v639 = vphi 0, %v651
          %v640 = vphi %v633, %v657
          %v641 = vphi %v433, %v640
          %p642 = scmp.lt.s32.totalorder %s635, %s623
          %p643 = pneg %p642
        $region62: #{tpu_custom_call.1} parent=35 // loop_header_branch
          %645 = sbr.rel (%p643) target = $region66
        $region63: #{tpu_custom_call.1} parent=35 // loop_body
          %vm646 = vcmp.eq.s32.totalorder %v408, %v640
          %vm647 = vcmp.eq.s32.totalorder %v409, %v640
          %v648 = vsel %vm646, 1, %v636
          %v649 = vsel %vm647, 1, %v637
          %v650 = vsel %vm646, %v641, %v638
          %v651 = vsel %vm647, %v641, %v639
          %v652 = vsel %vm646, %v624, 0.0
          %v653 = vsel %vm647, %v625, 0.0
          %v654 = vadd.f32 %v652, %v653
          %655 = vadd.xlane.f32.xlu0 %v654
          %v656 = vpop.xlane.xlu0 %655
          %v657 = vcvt.f32.s32.to.zero.pseudo %v656
          %s658 = sadd.s32 %s635, 1
        $region64: #{tpu_custom_call.1} parent=35 // loop_footer
          _
        $region65: #{tpu_custom_call.1} parent=35 // loop_footer_branch
          %634 = sbr.rel target = $region61
        $region66: #{tpu_custom_call.1} parent=35 // loop_exit
          _
        %659 = vst [vmem:[%s382] sm:$0xff] %v493
        %660 = vst [vmem:[%s382 + $0x8] sm:$0xff] %v494
        %661 = vst [vmem:[%s389] sm:$0xff] %v636
        %662 = vst [vmem:[%s389 + $0x8] sm:$0xff] %v637
        %663 = vst [vmem:[%s396] sm:$0xff] %v638
        %664 = vst [vmem:[%s396 + $0x8] sm:$0xff] %v639
        %s665 = sand.u32 %s145, 1
        %s666 = scalar_lea.sflag [#allocation4], %s665
        %s667 = sand.u32 %s145, 1
        %s668 = smul.addr %s667, 16
        %s669 = scalar_lea.vmem [#allocation10], %s668
        %s670 = sand.u32 %s33, 1
        %s671 = scalar_lea.sflag [#allocation12], %s670
        %s672 = sand.u32 %s171, 1
        %s673 = smul.addr %s672, 16
        %s674 = scalar_lea.vmem [#allocation11], %s673
        %s675 = sand.u32 %s33, 1
        %s676 = scalar_lea.sflag [#allocation12], %s675
        %s677 = sand.u32 %s197, 1
        %s678 = smul.addr %s677, 16
        %s679 = scalar_lea.vmem [#allocation13], %s678
        // Predicated region
        $region67: #{tpu_custom_call.1} parent=35 // pred_check
          %p680 = pneg %p155
        $region68: #{tpu_custom_call.1} parent=35 // pred_check_branch
          %682 = sbr.rel (%p680) target = $region70
        $region69: #{tpu_custom_call.1} parent=35 // pred_region
          %s684 = ssub.s32 256, 256
          %685 = vsyncadd %s666, %s684
          %s686 = smul.addr %s33, 2
          %s687 = smul.addr %s686, 128
          %s688 = scalar_lea.hbm %s4, %s687
          %s690 = sshll.u32 %s669, 4
          %s691 = int_to_ptr.vmem [resolvable:$true] %s690
          %693 = dma.vmem_to_hbm [thread:$0]  %s691, 256, %s688, %s666
        $region70: #{tpu_custom_call.1} parent=35 // pred_fallthru
          _
        // Predicated region
        $region71: #{tpu_custom_call.1} parent=35 // pred_check
          %p694 = pneg %p181
        $region72: #{tpu_custom_call.1} parent=35 // pred_check_branch
          %696 = sbr.rel (%p694) target = $region74
        $region73: #{tpu_custom_call.1} parent=35 // pred_region
          %s698 = ssub.s32 256, 256
          %699 = vsyncadd %s671, %s698
          %s700 = smul.addr %s33, 2
          %s701 = smul.addr %s700, 128
          %s702 = scalar_lea.hbm %s5, %s701
          %s704 = sshll.u32 %s674, 4
          %s705 = int_to_ptr.vmem [resolvable:$true] %s704
          %707 = dma.vmem_to_hbm [thread:$0]  %s705, 256, %s702, %s671
        $region74: #{tpu_custom_call.1} parent=35 // pred_fallthru
          _
        // Predicated region
        $region75: #{tpu_custom_call.1} parent=35 // pred_check
          %p708 = pneg %p207
        $region76: #{tpu_custom_call.1} parent=35 // pred_check_branch
          %710 = sbr.rel (%p708) target = $region78
        $region77: #{tpu_custom_call.1} parent=35 // pred_region
          %s712 = ssub.s32 256, 256
          %713 = vsyncadd %s676, %s712
          %s714 = smul.addr %s33, 2
          %s715 = smul.addr %s714, 128
          %s716 = scalar_lea.hbm %s6, %s715
          %s718 = sshll.u32 %s679, 4
          %s719 = int_to_ptr.vmem [resolvable:$true] %s718
          %721 = dma.vmem_to_hbm [thread:$0]  %s719, 256, %s716, %s676
        $region78: #{tpu_custom_call.1} parent=35 // pred_fallthru
          _
      $region36: #{tpu_custom_call.1} parent=5 // pred_fallthru
        _
      %p722 = scmp.le.s32.totalorder 2, %s28
      // Predicated region
      $region79: #{tpu_custom_call.1} parent=5 // pred_check
        %p723 = pneg %p722
      $region80: #{tpu_custom_call.1} parent=5 // pred_check_branch
        %725 = sbr.rel (%p723) target = $region82
      $region81: #{tpu_custom_call.1} parent=5 // pred_region
        %s726 = ssub.s32 %s28, 2
        // Predicated region
        $region83: #{tpu_custom_call.1} parent=81 // pred_check
          %p727 = pneg %p161
        $region84: #{tpu_custom_call.1} parent=81 // pred_check_branch
          %729 = sbr.rel (%p727) target = $region86
        $region85: #{tpu_custom_call.1} parent=81 // pred_region
          %s730 = sand.u32 %s146, 1
          %s731 = scalar_lea.sflag [#allocation4], %s730
          %s732 = sand.u32 %s146, 1
          %s733 = smul.addr %s732, 16
          %s734 = scalar_lea.vmem [#allocation10], %s733
          %735 = dma.done %s731, 256
        $region86: #{tpu_custom_call.1} parent=81 // pred_fallthru
          _
        // Predicated region
        $region87: #{tpu_custom_call.1} parent=81 // pred_check
          %p736 = pneg %p187
        $region88: #{tpu_custom_call.1} parent=81 // pred_check_branch
          %738 = sbr.rel (%p736) target = $region90
        $region89: #{tpu_custom_call.1} parent=81 // pred_region
          %s739 = sand.u32 %s34, 1
          %s740 = scalar_lea.sflag [#allocation12], %s739
          %s741 = sand.u32 %s172, 1
          %s742 = smul.addr %s741, 16
          %s743 = scalar_lea.vmem [#allocation11], %s742
          %744 = dma.done %s740, 256
        $region90: #{tpu_custom_call.1} parent=81 // pred_fallthru
          _
        // Predicated region
        $region91: #{tpu_custom_call.1} parent=81 // pred_check
          %p745 = pneg %p213
        $region92: #{tpu_custom_call.1} parent=81 // pred_check_branch
          %747 = sbr.rel (%p745) target = $region94
        $region93: #{tpu_custom_call.1} parent=81 // pred_region
          %s748 = sand.u32 %s34, 1
          %s749 = scalar_lea.sflag [#allocation12], %s748
          %s750 = sand.u32 %s198, 1
          %s751 = smul.addr %s750, 16
          %s752 = scalar_lea.vmem [#allocation13], %s751
          %753 = dma.done %s749, 256
        $region94: #{tpu_custom_call.1} parent=81 // pred_fallthru
          _
      $region82: #{tpu_custom_call.1} parent=5 // pred_fallthru
        _
    $region6: #{tpu_custom_call.1} parent=1 // loop_footer
      %s32 = sadd.s32 1, %s28
    $region7: #{tpu_custom_call.1} parent=1 // loop_footer_branch
      %27 = sbr.rel target = $region3
    $region8: #{tpu_custom_call.1} parent=1 // loop_exit
      _
    %754 = vsyncpa [#allocation3], 1
    %s755 = scalar_lea.sflag [#allocation3], 1
    %756 = vsyncpa %s755, 1
    %757 = vsyncpa [#allocation6], 1
    %s758 = scalar_lea.sflag [#allocation6], 1
    %759 = vsyncpa %s758, 1
    %760 = vsyncpa [#allocation9], 1
    %s761 = scalar_lea.sflag [#allocation9], 1
    %762 = vsyncpa %s761, 1
    %763 = vsyncpa [#allocation4], 1
    %s764 = scalar_lea.sflag [#allocation4], 1
    %765 = vsyncpa %s764, 1
    %766 = vsyncpa [#allocation12], 1
    %s767 = scalar_lea.sflag [#allocation12], 1
    %768 = vsyncpa %s767, 1

</llo_original>
